<compile_context>
chip_gen: v7x
topology: tpu7x:2x2x1
jax: 0.10.0
libtpu: 0.0.40
codegen_flags: <defaults>
</compile_context>

<pallas_src>
import functools

import jax
import jax.numpy as jnp
import numpy as np
from jax import lax
from jax.experimental import pallas as pl
from jax.experimental.pallas import tpu as pltpu

# Finite large-negative fill: exp underflows to exactly 0, (-1e30)*0 == 0
# (a -inf fill would give -inf*0 = NaN), and it never wins the running max.
_NEG_FILL = -1e30


def _round_up(x, m):
    return ((x + m - 1) // m) * m


def _attention_pooling_kernel(x_ref, o_ref, m_sc, s_sc, t_sc, *,
                              n_total, tn, ragged_n):
    """One (tb, tn, D) chunk of the online-softmax pooling reduction.

    Scratch (persists across the N grid axis, all (tb, D) f32):
      m_sc: running max, s_sc: running sum(exp), t_sc: running sum(x*exp).
    """
    n = pl.program_id(1)

    @pl.when(n == 0)
    def _init():
        m_sc[...] = jnp.full_like(m_sc, _NEG_FILL)
        s_sc[...] = jnp.zeros_like(s_sc)
        t_sc[...] = jnp.zeros_like(t_sc)

    x = x_ref[...].astype(jnp.float32)                    # (tb, tn, D)

    if ragged_n:
        # Mask node positions past N (last chunk reads undefined tail data).
        row = lax.broadcasted_iota(jnp.int32, x.shape, 1)
        valid = (n * tn + row) < n_total
        x = jnp.where(valid, x, _NEG_FILL)

    m_old = m_sc[...]                                     # (tb, D)
    m_new = jnp.maximum(m_old, jnp.max(x, axis=1))        # (tb, D)
    a = jnp.exp(m_old - m_new)                            # rescale, (tb, D)
    e = jnp.exp(x - m_new[:, None, :])                    # (tb, tn, D)
    s_sc[...] = a * s_sc[...] + jnp.sum(e, axis=1)        # softmax denominator
    t_sc[...] = a * t_sc[...] + jnp.sum(x * e, axis=1)    # unnormalized numerator
    m_sc[...] = m_new

    @pl.when(n == pl.num_programs(1) - 1)
    def _finalize():
        # Exact division: once per (tb, D) output tile, off the hot path.
        o_ref[...] = (t_sc[...] / s_sc[...]).astype(o_ref.dtype)


def attention_pooling(x, *, tb=8, max_tn=2048, vmem_budget_bytes=24 << 20):
    """x: (B, N, D) -> (B, D); equivalent to AttentionPooling.forward."""
    B, N, D = x.shape
    itemsize = int(np.dtype(x.dtype).itemsize)

    # Batch tile: for B <= 8 use the exact batch (block dim == full array dim is
    # legal); otherwise a multiple of 8 so the (tb, D) output tile keeps the
    # (8, 128) rule and the batch axis gets multiple "parallel" grid steps.
    if B <= 8:
        tb = B
    else:
        tb = max(8, (min(tb, B) // 8) * 8)

    # N-chunk: multiple of 8, capped so the per-step VMEM working set
    # (2x double-buffered input + ~3 f32 block temporaries for x, e, x*e)
    # stays inside the budget — N-independent footprint, fits v7x's 64 MiB.
    row_bytes = tb * D * (2 * itemsize + 3 * 4)
    tn_cap = max(8, ((vmem_budget_bytes // row_bytes) // 8) * 8)
    tn = max(8, min(_round_up(N, 8), _round_up(max_tn, 8), tn_cap))

    grid = (pl.cdiv(B, tb), pl.cdiv(N, tn))
    ragged_n = (N % tn) != 0

    kernel = functools.partial(
        _attention_pooling_kernel, n_total=N, tn=tn, ragged_n=ragged_n)

    # Explicit scoped-VMEM ceiling: double-buffered input + f32 temporaries +
    # accumulators + output tile, with headroom; capped below v7x's 64 MiB.
    vmem_needed = (2 * tb * tn * D * itemsize      # double-buffered input block
                   + 3 * tb * tn * D * 4           # f32 temporaries (x, e, x*e)
                   + 3 * tb * D * 4                # scratch accumulators
                   + 2 * tb * D * itemsize)        # double-buffered output tile
    vmem_limit = int(min(max(vmem_needed + (4 << 20), 16 << 20), 56 << 20))

    out = pl.pallas_call(
        kernel,
        out_shape=jax.ShapeDtypeStruct((B, D), x.dtype),
        grid_spec=pltpu.PrefetchScalarGridSpec(
            num_scalar_prefetch=0,
            grid=grid,
            in_specs=[pl.BlockSpec((tb, tn, D), lambda b, n: (b, n, 0))],
            out_specs=pl.BlockSpec((tb, D), lambda b, n: (b, 0)),
            scratch_shapes=[
                pltpu.VMEM((tb, D), jnp.float32),  # running max
                pltpu.VMEM((tb, D), jnp.float32),  # running sum(exp)
                pltpu.VMEM((tb, D), jnp.float32),  # running sum(x*exp)
            ],
        ),
        compiler_params=pltpu.CompilerParams(
            dimension_semantics=("parallel", "arbitrary"),
            vmem_limit_bytes=vmem_limit,
        ),
        cost_estimate=pl.CostEstimate(
            flops=6 * B * N * D,
            transcendentals=B * N * D,
            bytes_accessed=B * N * D * itemsize + B * D * itemsize,
        ),
    )(x)
    return out


def attention_pooling_ref(x):
    xf = x.astype(jnp.float32)
    w = jax.nn.softmax(xf, axis=1)
    return jnp.sum(xf * w, axis=1).astype(x.dtype)


if __name__ == "__main__":
    k0, k1, k2 = jax.random.split(jax.random.PRNGKey(0), 3)

    # Test 1: small shapes implied by the module (batch, nodes, input_dim).
    B, N, D = 2, 8, 128
    x = jax.random.normal(k0, (B, N, D), dtype=jnp.float32)
    out = jax.block_until_ready(attention_pooling(x))
    ref = attention_pooling_ref(x)
    assert out.shape == (B, D)
    assert jnp.allclose(out, ref, atol=1e-4, rtol=1e-4), \
        float(jnp.max(jnp.abs(out - ref)))

    # Test 2: ragged N (in-kernel mask path) + multi-chunk online softmax
    # (N=20 with forced tn=8 -> 3 reduction steps, last one partial).
    B2, N2, D2 = 3, 20, 128
    x2 = jax.random.normal(k1, (B2, N2, D2), dtype=jnp.float32)
    out2 = jax.block_until_ready(attention_pooling(x2, max_tn=8))
    ref2 = attention_pooling_ref(x2)
    assert out2.shape == (B2, D2)
    assert jnp.allclose(out2, ref2, atol=1e-4, rtol=1e-4), \
        float(jnp.max(jnp.abs(out2 - ref2)))

    # Test 3: batch tail (B=10 with tb=8 -> partial last batch block) and a
    # multi-step "parallel" batch axis (megacore-friendly).
    B3, N3, D3 = 10, 16, 256
    x3 = jax.random.normal(k2, (B3, N3, D3), dtype=jnp.float32)
    out3 = jax.block_until_ready(attention_pooling(x3))
    ref3 = attention_pooling_ref(x3)
    assert out3.shape == (B3, D3)
    assert jnp.allclose(out3, ref3, atol=1e-4, rtol=1e-4), \
        float(jnp.max(jnp.abs(out3 - ref3)))

    print("KERNEL_OK")
</pallas_src>

<mosaic_0001>
module attributes {stable_mosaic.version = 11 : i64} {
  func.func @_attention_pooling_kernel(%arg0: i32, %arg1: i32, %arg2: memref<2x8x128xf32, #tpu.memory_space<vmem>>, %arg3: memref<2x128xf32, #tpu.memory_space<vmem>>, %arg4: memref<2x128xf32, #tpu.memory_space<vmem>>, %arg5: memref<2x128xf32, #tpu.memory_space<vmem>>, %arg6: memref<2x128xf32, #tpu.memory_space<vmem>>) attributes {dimension_semantics = [#tpu.dimension_semantics<parallel>, #tpu.dimension_semantics<arbitrary>], iteration_bounds = array<i64: 1, 1>, scalar_prefetch = 0 : i64, scratch_operands = 3 : i64, tpu.core_type = #tpu.core_type<tc>, window_params = [{transform_indices = @transform_0, window_bounds = array<i64: 2, 8, 128>}, {transform_indices = @transform_1, window_bounds = array<i64: 2, 128>}]} {
    %c0_i32 = arith.constant 0 : i32
    %0 = arith.cmpi eq, %arg1, %c0_i32 : i32
    %1 = arith.extui %0 : i1 to i32
    %c0_i32_0 = arith.constant 0 : i32
    %2 = arith.cmpi ne, %1, %c0_i32_0 : i32
    scf.if %2 {
      %cst_19 = arith.constant -1.000000e+30 : f32
      %28 = vector.broadcast %cst_19 : f32 to vector<2x128xf32>
      %c0_20 = arith.constant 0 : index
      %c0_21 = arith.constant 0 : index
      %29 = vector.load %arg4[%c0_20, %c0_21] : memref<2x128xf32, #tpu.memory_space<vmem>>, vector<2x128xf32>
      tpu.vector_store %arg4[%c0_20, %c0_21], %28 {strides = array<i32>} : memref<2x128xf32, #tpu.memory_space<vmem>>, vector<2x128xf32>,
      %cst_22 = arith.constant 0.000000e+00 : f32
      %30 = vector.broadcast %cst_22 : f32 to vector<2x128xf32>
      %c0_23 = arith.constant 0 : index
      %c0_24 = arith.constant 0 : index
      %31 = vector.load %arg5[%c0_23, %c0_24] : memref<2x128xf32, #tpu.memory_space<vmem>>, vector<2x128xf32>
      tpu.vector_store %arg5[%c0_23, %c0_24], %30 {strides = array<i32>} : memref<2x128xf32, #tpu.memory_space<vmem>>, vector<2x128xf32>,
      %cst_25 = arith.constant 0.000000e+00 : f32
      %32 = vector.broadcast %cst_25 : f32 to vector<2x128xf32>
      %c0_26 = arith.constant 0 : index
      %c0_27 = arith.constant 0 : index
      %33 = vector.load %arg6[%c0_26, %c0_27] : memref<2x128xf32, #tpu.memory_space<vmem>>, vector<2x128xf32>
      tpu.vector_store %arg6[%c0_26, %c0_27], %32 {strides = array<i32>} : memref<2x128xf32, #tpu.memory_space<vmem>>, vector<2x128xf32>,
    } else {
    }
    %c0 = arith.constant 0 : index
    %c0_1 = arith.constant 0 : index
    %c0_2 = arith.constant 0 : index
    %3 = vector.load %arg2[%c0, %c0_1, %c0_2] : memref<2x8x128xf32, #tpu.memory_space<vmem>>, vector<2x8x128xf32>
    %c0_3 = arith.constant 0 : index
    %c0_4 = arith.constant 0 : index
    %4 = vector.load %arg4[%c0_3, %c0_4] : memref<2x128xf32, #tpu.memory_space<vmem>>, vector<2x128xf32>
    %cst = arith.constant dense<0xFF800000> : vector<2x128xf32>
    %5 = vector.multi_reduction <maximumf>, %3, %cst [1] : vector<2x8x128xf32> to vector<2x128xf32>
    %6 = arith.maximumf %4, %5 : vector<2x128xf32>
    %7 = arith.subf %4, %6 : vector<2x128xf32>
    %8 = math.exp %7 : vector<2x128xf32>
    %9 = vector.shape_cast %6 : vector<2x128xf32> to vector<2x1x128xf32>
    %10 = vector.broadcast %9 : vector<2x1x128xf32> to vector<2x8x128xf32>
    %11 = arith.subf %3, %10 : vector<2x8x128xf32>
    %12 = math.exp %11 : vector<2x8x128xf32>
    %c0_5 = arith.constant 0 : index
    %c0_6 = arith.constant 0 : index
    %13 = vector.load %arg5[%c0_5, %c0_6] : memref<2x128xf32, #tpu.memory_space<vmem>>, vector<2x128xf32>
    %14 = arith.mulf %8, %13 : vector<2x128xf32>
    %cst_7 = arith.constant dense<0.000000e+00> : vector<2x128xf32>
    %15 = vector.multi_reduction <add>, %12, %cst_7 [1] : vector<2x8x128xf32> to vector<2x128xf32>
    %16 = arith.addf %14, %15 : vector<2x128xf32>
    %c0_8 = arith.constant 0 : index
    %c0_9 = arith.constant 0 : index
    %17 = vector.load %arg5[%c0_8, %c0_9] : memref<2x128xf32, #tpu.memory_space<vmem>>, vector<2x128xf32>
    tpu.vector_store %arg5[%c0_8, %c0_9], %16 {strides = array<i32>} : memref<2x128xf32, #tpu.memory_space<vmem>>, vector<2x128xf32>,
    %c0_10 = arith.constant 0 : index
    %c0_11 = arith.constant 0 : index
    %18 = vector.load %arg6[%c0_10, %c0_11] : memref<2x128xf32, #tpu.memory_space<vmem>>, vector<2x128xf32>
    %19 = arith.mulf %8, %18 : vector<2x128xf32>
    %20 = arith.mulf %3, %12 : vector<2x8x128xf32>
    %cst_12 = arith.constant dense<0.000000e+00> : vector<2x128xf32>
    %21 = vector.multi_reduction <add>, %20, %cst_12 [1] : vector<2x8x128xf32> to vector<2x128xf32>
    %22 = arith.addf %19, %21 : vector<2x128xf32>
    %c0_13 = arith.constant 0 : index
    %c0_14 = arith.constant 0 : index
    %23 = vector.load %arg6[%c0_13, %c0_14] : memref<2x128xf32, #tpu.memory_space<vmem>>, vector<2x128xf32>
    tpu.vector_store %arg6[%c0_13, %c0_14], %22 {strides = array<i32>} : memref<2x128xf32, #tpu.memory_space<vmem>>, vector<2x128xf32>,
    %c0_15 = arith.constant 0 : index
    %c0_16 = arith.constant 0 : index
    %24 = vector.load %arg4[%c0_15, %c0_16] : memref<2x128xf32, #tpu.memory_space<vmem>>, vector<2x128xf32>
    tpu.vector_store %arg4[%c0_15, %c0_16], %6 {strides = array<i32>} : memref<2x128xf32, #tpu.memory_space<vmem>>, vector<2x128xf32>,
    %c0_i32_17 = arith.constant 0 : i32
    %25 = arith.cmpi eq, %arg1, %c0_i32_17 : i32
    %26 = arith.extui %25 : i1 to i32
    %c0_i32_18 = arith.constant 0 : i32
    %27 = arith.cmpi ne, %26, %c0_i32_18 : i32
    scf.if %27 {
      %c0_19 = arith.constant 0 : index
      %c0_20 = arith.constant 0 : index
      %28 = vector.load %arg6[%c0_19, %c0_20] : memref<2x128xf32, #tpu.memory_space<vmem>>, vector<2x128xf32>
      %c0_21 = arith.constant 0 : index
      %c0_22 = arith.constant 0 : index
      %29 = vector.load %arg5[%c0_21, %c0_22] : memref<2x128xf32, #tpu.memory_space<vmem>>, vector<2x128xf32>
      %30 = arith.divf %28, %29 : vector<2x128xf32>
      %c0_23 = arith.constant 0 : index
      %c0_24 = arith.constant 0 : index
      %31 = vector.load %arg3[%c0_23, %c0_24] : memref<2x128xf32, #tpu.memory_space<vmem>>, vector<2x128xf32>
      tpu.vector_store %arg3[%c0_23, %c0_24], %30 {strides = array<i32>} : memref<2x128xf32, #tpu.memory_space<vmem>>, vector<2x128xf32>,
    } else {
    }
    return
  }
  func.func @transform_0(%arg0: i32, %arg1: i32) -> (i32, i32, i32) {
    %c0_i32 = arith.constant 0 : i32
    %c0_i32_0 = arith.constant 0 : i32
    return %arg0, %arg1, %c0_i32 : i32, i32, i32
  }
  func.func @transform_1(%arg0: i32, %arg1: i32) -> (i32, i32) {
    %c0_i32 = arith.constant 0 : i32
    %c0_i32_0 = arith.constant 0 : i32
    return %arg0, %c0_i32 : i32, i32
  }
}

</mosaic_0001>

<llo_original>
// kernel: tpu_custom_call.1
$region0: #{tpu_custom_call.1}
  #allocation0 [shape = 'u32[]', space=smem, size = 0x4, offset = 0x4, fixed_abs, tag = 'smem constant byte address 0x4 - core index']
  #allocation1 [shape = 'u32[144,128]{1,0:T(1,128)}', space=vmem, size = 0x12000, scoped, tag = 'internal scratch']
  #allocation2 [shape = 'f32[2,128]{1,0:T(2,128)}', space=vmem, size = 0x400, scoped, tag = 'scratch operand']
  #allocation3 [shape = 'f32[2,128]{1,0:T(2,128)}', space=vmem, size = 0x400, scoped, tag = 'scratch operand']
  #allocation4 [shape = 'f32[2,128]{1,0:T(2,128)}', space=vmem, size = 0x400, scoped, tag = 'scratch operand']
  %s0 = inlined_call_operand.hbm [shape: f32[2,8,128], index: 0, kind: input, shape index: {}]
  %s1 = inlined_call_operand.hbm [shape: f32[2,128], index: 1, kind: output, shape index: {}]
  %s2 = sld [smem:[#allocation0]]
  $region26: #{tpu_custom_call.1} parent=0
    _
  %s4 = ssub.s32 1, %s2
  %s5 = scalar_select 0, %s4, %s2
  $region1: #{tpu_custom_call.1} parent=0
    #allocation5 [shape = 'u8[8192]{0}', space=vmem, size = 0x2000, scoped, tag = 'input window, operand 0, single buffered']
    #allocation6 [shape = 's32[1]{0}', space=sflag, size = 0x4, scoped, tag = 'scoped memory for tpu_custom_call.1']
    #allocation7 [shape = 's32[1]{0}', space=sflag, size = 0x4, scoped, tag = 'scoped memory for tpu_custom_call.1']
    #allocation8 [shape = 'u8[1024]{0}', space=vmem, size = 0x400, scoped, tag = 'output window, operand 0, single buffered']
    %6 = vsyncpa [#allocation6], 0
    %7 = vsyncpa [#allocation7], 0
    // Predicated region
    $region2: #{tpu_custom_call.1} parent=1 // pred_check
      _
    $region3: #{tpu_custom_call.1} parent=1 // pred_check_branch
      %9 = sbr.rel (0) target = $region5
    $region4: #{tpu_custom_call.1} parent=1 // pred_region
      %s11 = ssub.s32 256, 256
      %12 = vsyncadd [#allocation6], %s11
      %s13 = sshll.u32 [#allocation5], 4
      %s14 = int_to_ptr.vmem [resolvable:$true] %s13
      %19 = dma.hbm_to_vmem [thread:$0]  %s0, 256, %s14, [#allocation6], 128, 128, 8
    $region5: #{tpu_custom_call.1} parent=1 // pred_fallthru
      _
    // Predicated region
    $region6: #{tpu_custom_call.1} parent=1 // pred_check
      _
    $region7: #{tpu_custom_call.1} parent=1 // pred_check_branch
      %21 = sbr.rel (0) target = $region9
    $region8: #{tpu_custom_call.1} parent=1 // pred_region
      %22 = dma.done [#allocation6], 256
    $region9: #{tpu_custom_call.1} parent=1 // pred_fallthru
      _
    %p23 = scmp.eq.s32.totalorder 0, 0
    // Predicated region
    $region10: #{tpu_custom_call.1} parent=1 // pred_check
      %p24 = pneg %p23
    $region11: #{tpu_custom_call.1} parent=1 // pred_check_branch
      %26 = sbr.rel (%p24) target = $region13
    $region12: #{tpu_custom_call.1} parent=1 // pred_region
      %27 = vst [vmem:[#allocation2] sm:$0x3] -1e+30
      %28 = vst [vmem:[#allocation3] sm:$0x3] 0.0
      %29 = vst [vmem:[#allocation4] sm:$0x3] 0.0
    $region13: #{tpu_custom_call.1} parent=1 // pred_fallthru
      _
    %v30 = vld [vmem:[#allocation5] sm:$0xff]
    %v31 = vld [vmem:[#allocation5 + $0x8] sm:$0xff]
    %v32 = vld [vmem:[#allocation2] sm:$0x3]
    %v33 = vrot.slane %v30, 4
    %v34 = vmax.f32 %v30, %v33
    %v35 = vrot.slane %v34, 2
    %v36 = vmax.f32 %v34, %v35
    %v37 = vrot.slane %v36, 1
    %v38 = vmax.f32 %v36, %v37
    %v39 = vrot.slane %v31, 4
    %v40 = vmax.f32 %v31, %v39
    %v41 = vrot.slane %v40, 2
    %v42 = vmax.f32 %v40, %v41
    %v43 = vrot.slane %v42, 1
    %v44 = vmax.f32 %v42, %v43
    %vm47 = vcmask 1041409
    %v48 = vsel %vm47, %v44, %v38
    %v50 = vmax.f32 %v32, %v48
    %v51 = vsub.f32 %v32, %v50
    %v52 = vmul.f32 %v51, 1.442695
    %v53 = vpow.pop %v52
    %v56 = vunpack.c.l.s4 1966171168
    %v57 = vunpack.c.0.s8 %v56
    %v58 = vlaneseq
    %v59 = vshrl.u32 %v58, 7
    %v60 = vsub.s32 %v57, %v59
    %v61 = vrot.slane %v50, %v60
    %v62 = vcombine.high %v61, %v61
    %v64 = vunpack.c.l.s4 1966171168
    %v65 = vunpack.c.0.s8 %v64
    %v66 = vlaneseq
    %v67 = vshrl.u32 %v66, 7
    %v68 = vsub.s32 %v65, %v67
    %v69 = vrot.slane %v61, %v68
    %v71 = vunpack.c.l.s4 1966171168
    %v72 = vunpack.c.0.s8 %v71
    %v73 = vlaneseq
    %v74 = vshrl.u32 %v73, 7
    %v75 = vsub.s32 %v72, %v74
    %v76 = vrot.slane %v62, %v75
    %v77 = vlaneseq
    %v78 = vshrl.u32 %v77, 7
    %v79 = vsub.s32 0, %v78
    %v80 = vrot.slane %v69, %v79
    %v81 = vlaneseq
    %v82 = vshrl.u32 %v81, 7
    %v83 = vsub.s32 0, %v82
    %v84 = vrot.slane %v76, %v83
    %v87 = vsub.f32 %v30, %v80
    %v88 = vsub.f32 %v31, %v84
    %v89 = vmul.f32 %v87, 1.442695
    %v90 = vpow.pop %v89
    %v91 = vmul.f32 %v88, 1.442695
    %v92 = vpow.pop %v91
    %v93 = vld [vmem:[#allocation3] sm:$0x3]
    %v94 = vmul.f32 %v53, %v93
    %v95 = vrot.slane %v90, 4
    %v96 = vadd.f32 %v90, %v95
    %v97 = vrot.slane %v96, 2
    %v98 = vadd.f32 %v96, %v97
    %v99 = vrot.slane %v98, 1
    %v100 = vadd.f32 %v98, %v99
    %v101 = vrot.slane %v92, 4
    %v102 = vadd.f32 %v92, %v101
    %v103 = vrot.slane %v102, 2
    %v104 = vadd.f32 %v102, %v103
    %v105 = vrot.slane %v104, 1
    %v106 = vadd.f32 %v104, %v105
    %v109 = vsel %vm47, %v106, %v100
    %v111 = vadd.f32 %v94, %v109
    %112 = vst [vmem:[#allocation3] sm:$0x3] %v111
    %v113 = vld [vmem:[#allocation4] sm:$0x3]
    %v114 = vmul.f32 %v53, %v113
    %v115 = vmul.f32 %v30, %v90
    %v116 = vmul.f32 %v31, %v92
    %v117 = vrot.slane %v115, 4
    %v118 = vadd.f32 %v115, %v117
    %v119 = vrot.slane %v118, 2
    %v120 = vadd.f32 %v118, %v119
    %v121 = vrot.slane %v120, 1
    %v122 = vadd.f32 %v120, %v121
    %v123 = vrot.slane %v116, 4
    %v124 = vadd.f32 %v116, %v123
    %v125 = vrot.slane %v124, 2
    %v126 = vadd.f32 %v124, %v125
    %v127 = vrot.slane %v126, 1
    %v128 = vadd.f32 %v126, %v127
    %v131 = vsel %vm47, %v128, %v122
    %v133 = vadd.f32 %v114, %v131
    %134 = vst [vmem:[#allocation4] sm:$0x3] %v133
    %135 = vst [vmem:[#allocation2] sm:$0x3] %v50
    // Predicated region
    $region14: #{tpu_custom_call.1} parent=1 // pred_check
      %p136 = pneg %p23
    $region15: #{tpu_custom_call.1} parent=1 // pred_check_branch
      %138 = sbr.rel (%p136) target = $region17
    $region16: #{tpu_custom_call.1} parent=1 // pred_region
      %v139 = vld [vmem:[#allocation4] sm:$0x3]
      %v140 = vld [vmem:[#allocation3] sm:$0x3]
      %v141 = vrcp.pop %v140
      %v142 = vmul.f32 %v139, %v141
      %143 = vst [vmem:[#allocation8] sm:$0x3] %v142
    $region17: #{tpu_custom_call.1} parent=1 // pred_fallthru
      _
    // Predicated region
    $region18: #{tpu_custom_call.1} parent=1 // pred_check
      _
    $region19: #{tpu_custom_call.1} parent=1 // pred_check_branch
      %145 = sbr.rel (0) target = $region21
    $region20: #{tpu_custom_call.1} parent=1 // pred_region
      %s147 = ssub.s32 32, 32
      %148 = vsyncadd [#allocation7], %s147
      %s150 = sshll.u32 [#allocation8], 4
      %s151 = int_to_ptr.vmem [resolvable:$true] %s150
      %153 = dma.vmem_to_hbm [thread:$0]  %s151, 32, %s1, [#allocation7]
    $region21: #{tpu_custom_call.1} parent=1 // pred_fallthru
      _
    // Predicated region
    $region22: #{tpu_custom_call.1} parent=1 // pred_check
      _
    $region23: #{tpu_custom_call.1} parent=1 // pred_check_branch
      %155 = sbr.rel (0) target = $region25
    $region24: #{tpu_custom_call.1} parent=1 // pred_region
      %156 = dma.done [#allocation7], 32
    $region25: #{tpu_custom_call.1} parent=1 // pred_fallthru
      _
    %157 = vsyncpa [#allocation6], 1
    %158 = vsyncpa [#allocation7], 1

</llo_original>
